<compile_context>
chip_gen: v7x
topology: tpu7x:2x2x1
jax: 0.10.0
libtpu: 0.0.40
codegen_flags: <defaults>
</compile_context>

<pallas_src>
import functools
import math
import random

import numpy as np
import jax
import jax.numpy as jnp
from jax.experimental import pallas as pl
from jax.experimental.pallas import tpu as pltpu


# ---------------------------------------------------------------------------
# Small host helpers.
# ---------------------------------------------------------------------------
def _cdiv(a: int, b: int) -> int:
    return -(-a // b)


def _round_up(x: int, m: int) -> int:
    return ((x + m - 1) // m) * m


def _vmem_capacity_bytes() -> int:
    """Per-TensorCore VMEM capacity; conservative fallback if unavailable."""
    try:
        info = pltpu.get_tpu_info()
        cap = int(getattr(info, "vmem_capacity_bytes", 0))
        if cap > 0:
            return cap
    except Exception:
        pass
    return 64 * 1024 * 1024   # v7x per-core VMEM (the smallest of v5e/v6e/v7x)


# ---------------------------------------------------------------------------
# Host-side random parameter generation (mirrors the torch module's draws).
# ---------------------------------------------------------------------------
def _interp_weight_matrix(in_size: int, out_size: int) -> np.ndarray:
    """Linear interp weights (align_corners=False), shape (in, out)."""
    M = np.zeros((in_size, out_size), dtype=np.float32)
    if out_size <= 0:
        return M
    scale = in_size / out_size
    for j in range(out_size):
        src = (j + 0.5) * scale - 0.5
        src = min(max(src, 0.0), in_size - 1)
        x0 = int(math.floor(src))
        x1 = min(x0 + 1, in_size - 1)
        w1 = src - x0
        M[x0, j] += 1.0 - w1
        M[x1, j] += w1
    return M


def _build_warp_matrix(dim: int, max_warp_length: int, rng: random.Random) -> np.ndarray:
    """Returns (dim_in, dim_out) so `warped = x @ W` along the warped axis."""
    if max_warp_length == 0:
        return np.eye(dim, dtype=np.float32)
    if 2 * max_warp_length >= dim:
        raise ValueError("max_warp_length must be smaller than half the warped axis size")
    w0 = rng.randint(max_warp_length, dim - max_warp_length)
    w = rng.randint(-max_warp_length, max_warp_length + 1)
    lower_out = w0 + w
    # TODO(synk): torch errors on a degenerate (size-0) segment; clamp to keep
    # the interpolation well-defined while preserving the warp semantics otherwise.
    lower_out = min(max(lower_out, 1), dim - 1)
    upper_out = dim - lower_out
    M = np.zeros((dim, dim), dtype=np.float32)
    M[:w0, :lower_out] = _interp_weight_matrix(w0, lower_out)
    M[w0:, lower_out:] = _interp_weight_matrix(dim - w0, upper_out)
    return M


def _gen_mask_intervals(rng: random.Random, dim: int, num_masks: int,
                        max_mask_length: int, max_mask_proportion: float):
    """Mirrors mask_along_axis: one mask_size draw, then a start per mask."""
    pairs = []
    max_mask_length = min(max_mask_length, int(dim * max_mask_proportion))
    if max_mask_length < 1:
        return pairs
    # TODO(synk): host python RNG cannot reproduce the torch module's global
    # `random` stream bit-for-bit; draw order/semantics are mirrored instead.
    mask_size = rng.randint(0, max_mask_length)
    for _ in range(num_masks):
        mask_start = rng.randint(0, dim - mask_size)
        pairs.append((mask_start, mask_start + mask_size))
    return pairs


# ---------------------------------------------------------------------------
# In-kernel mask helper (1-D interval tests, single broadcast OR + select).
# ---------------------------------------------------------------------------
def _mask_tile(mask_ref, row0, col0, rows, cols, num_row_masks, num_col_masks,
               row_period):
    if num_row_masks == 0 and num_col_masks == 0:
        return None
    r = row0 + jax.lax.broadcasted_iota(jnp.int32, (rows, 1), 0)
    if row_period is not None:
        r = r % row_period
    row_m = jnp.zeros((rows, 1), dtype=jnp.bool_)
    for mi in range(num_row_masks):
        s = mask_ref[2 * mi]
        e = mask_ref[2 * mi + 1]
        row_m = row_m | ((r >= s) & (r < e))
    c = col0 + jax.lax.broadcasted_iota(jnp.int32, (1, cols), 1)
    col_m = jnp.zeros((1, cols), dtype=jnp.bool_)
    off = 2 * num_row_masks
    for mi in range(num_col_masks):
        s = mask_ref[off + 2 * mi]
        e = mask_ref[off + 2 * mi + 1]
        col_m = col_m | ((c >= s) & (c < e))
    return row_m | col_m


def _apply_masks(y, mask_ref, row0, col0, num_row_masks, num_col_masks,
                 row_period, mask_value):
    m = _mask_tile(mask_ref, row0, col0, y.shape[0], y.shape[1],
                   num_row_masks, num_col_masks, row_period)
    if m is None:
        return y
    return jnp.where(m, jnp.asarray(mask_value, dtype=y.dtype), y)


# ---------------------------------------------------------------------------
# Kernels.
# ---------------------------------------------------------------------------
def _warp_time_single_k_kernel(mask_ref, x_ref, w_ref, o_ref, *,
                               period, nfm, ntm, mask_value, tm):
    """Path A (warp along last axis): resident W, single dot per row tile."""
    i = pl.program_id(0)                               # hoisted: never inside pl.when
    y = jnp.dot(x_ref[...].astype(jnp.float32), w_ref[...].astype(jnp.float32),
                preferred_element_type=jnp.float32)
    y = _apply_masks(y, mask_ref, row0=i * tm, col0=0,
                     num_row_masks=nfm, num_col_masks=ntm,
                     row_period=period, mask_value=mask_value)
    o_ref[...] = y.astype(o_ref.dtype)


def _warp_time_k_tiled_kernel(mask_ref, x_ref, w_ref, o_ref, acc_ref, *,
                              period, nfm, ntm, mask_value, tm, tn, tk, K):
    """Path B fallback (very long warped axis): K-tiled matmul, f32 accumulator."""
    i = pl.program_id(0)
    j = pl.program_id(1)
    k = pl.program_id(2)
    nk = pl.num_programs(2)

    @pl.when(k == 0)
    def _():
        acc_ref[...] = jnp.zeros_like(acc_ref)

    # Zero the K tail of both operands so out-of-bounds garbage from partial
    # edge blocks can never reach valid output rows (no host-side padding).
    kcol = k * tk + jax.lax.broadcasted_iota(jnp.int32, (1, tk), 1)
    x = jnp.where(kcol < K, x_ref[...].astype(jnp.float32), 0.0)
    krow = k * tk + jax.lax.broadcasted_iota(jnp.int32, (tk, 1), 0)
    w = jnp.where(krow < K, w_ref[...].astype(jnp.float32), 0.0)
    acc_ref[...] += jnp.dot(x, w, preferred_element_type=jnp.float32)

    # Built at the kernel top level (cheap (tm,1)/(1,tn) interval tests) so no
    # program_id / SMEM read has to live inside the pl.when branch.
    m = _mask_tile(mask_ref, i * tm, j * tn, tm, tn, nfm, ntm, period)

    @pl.when(k == nk - 1)
    def _():
        y = acc_ref[...]
        if m is not None:
            y = jnp.where(m, jnp.float32(mask_value), y)
        o_ref[...] = y.astype(o_ref.dtype)


def _warp_freq_kernel(mask_ref, x_ref, wt_ref, o_ref, *,
                      nfm, ntm, mask_value, tt):
    """warp_axis=1: left-multiply W^T @ x on the original (N,F,T) layout."""
    jt = pl.program_id(1)
    y = jnp.dot(wt_ref[...].astype(jnp.float32), x_ref[0].astype(jnp.float32),
                preferred_element_type=jnp.float32)          # (Fout, tt)
    y = _apply_masks(y, mask_ref, row0=0, col0=jt * tt,
                     num_row_masks=nfm, num_col_masks=ntm,
                     row_period=None, mask_value=mask_value)
    o_ref[0] = y.astype(o_ref.dtype)


# ---------------------------------------------------------------------------
# Wrappers.
# ---------------------------------------------------------------------------
def _choose_tm(M: int) -> int:
    if M <= 16:
        return max(M, 1)
    # >=2 row blocks so both v7x TensorCores get work; cap the tile at 512 rows.
    return min(512, _round_up(_cdiv(M, 2), 8))


def _warp_time_axis(specgram, Wmat, mask_params, nfm, ntm, mask_value, out_dtype,
                    cap, vmem_limit, force_k_tiled):
    N, F, T = specgram.shape
    x2 = specgram.reshape(N * F, T)               # free reshape: no pad / cast pass
    M, K = x2.shape
    Nout = Wmat.shape[1]
    w = jnp.asarray(Wmat, dtype=jnp.float32)      # f32 weights: parity with torch

    # ---- Path A: W fully VMEM-resident, one dot per row tile -----------------
    tm = _choose_tm(M)

    def _fits(tm_):
        need = (K * Nout                # resident W (constant index_map -> 1 fetch)
                + 2 * tm_ * K           # double-buffered x tile
                + 2 * tm_ * Nout        # double-buffered output tile
                + tm_ * Nout) * 4       # f32 dot result headroom
        return need <= int(cap * 0.55)

    while not _fits(tm) and tm > 8:
        tm = max(8, _round_up(tm // 2, 8))
    use_resident = (not force_k_tiled) and _fits(tm)

    if use_resident:
        kernel = functools.partial(_warp_time_single_k_kernel, period=F,
                                   nfm=nfm, ntm=ntm, mask_value=float(mask_value),
                                   tm=tm)
        out = pl.pallas_call(
            kernel,
            out_shape=jax.ShapeDtypeStruct((M, Nout), out_dtype),
            grid_spec=pltpu.PrefetchScalarGridSpec(
                num_scalar_prefetch=1,
                grid=(_cdiv(M, tm),),
                in_specs=[
                    pl.BlockSpec((tm, K), lambda i, m: (i, 0)),
                    pl.BlockSpec((K, Nout), lambda i, m: (0, 0)),   # fetched once
                ],
                out_specs=pl.BlockSpec((tm, Nout), lambda i, m: (i, 0)),
            ),
            compiler_params=pltpu.CompilerParams(
                dimension_semantics=("parallel",),
                vmem_limit_bytes=vmem_limit,
            ),
        )(mask_params, x2, w)
        return out.reshape(N, F, Nout)

    # ---- Path B: K-tiled fallback (W does not fit VMEM; very long T) ---------
    # TODO(synk): exploit W's banded (<=2 nonzeros/column) structure with a
    # gather+lerp path or band-limited k-tile skipping instead of a dense matmul.
    tm2 = min(256, _round_up(M, 8))
    tn2 = min(512, _round_up(Nout, 128))
    tk2 = min(512, _round_up(K, 128))
    kernel = functools.partial(_warp_time_k_tiled_kernel, period=F,
                               nfm=nfm, ntm=ntm, mask_value=float(mask_value),
                               tm=tm2, tn=tn2, tk=tk2, K=K)
    out = pl.pallas_call(
        kernel,
        out_shape=jax.ShapeDtypeStruct((M, Nout), out_dtype),
        grid_spec=pltpu.PrefetchScalarGridSpec(
            num_scalar_prefetch=1,
            grid=(_cdiv(M, tm2), _cdiv(Nout, tn2), _cdiv(K, tk2)),
            in_specs=[
                pl.BlockSpec((tm2, tk2), lambda i, j, k, m: (i, k)),
                pl.BlockSpec((tk2, tn2), lambda i, j, k, m: (k, j)),
            ],
            out_specs=pl.BlockSpec((tm2, tn2), lambda i, j, k, m: (i, j)),
            scratch_shapes=[pltpu.VMEM((tm2, tn2), jnp.float32)],
        ),
        compiler_params=pltpu.CompilerParams(
            dimension_semantics=("parallel", "parallel", "arbitrary"),
            vmem_limit_bytes=vmem_limit,
        ),
    )(mask_params, x2, w)
    return out.reshape(N, F, Nout)


def _warp_freq_axis(specgram, Wmat, mask_params, nfm, ntm, mask_value, out_dtype,
                    vmem_limit):
    N, F, T = specgram.shape
    Fout = Wmat.shape[1]
    wt = jnp.asarray(Wmat.T, dtype=jnp.float32)   # (Fout, F): no host transpose of x
    tt = T if T <= 512 else 512                   # lane-dense time tiles
    kernel = functools.partial(_warp_freq_kernel, nfm=nfm, ntm=ntm,
                               mask_value=float(mask_value), tt=tt)
    out = pl.pallas_call(
        kernel,
        out_shape=jax.ShapeDtypeStruct((N, Fout, T), out_dtype),
        grid_spec=pltpu.PrefetchScalarGridSpec(
            num_scalar_prefetch=1,
            grid=(N, _cdiv(T, tt)),
            in_specs=[
                pl.BlockSpec((1, F, tt), lambda n, jt, m: (n, 0, jt)),
                pl.BlockSpec((Fout, F), lambda n, jt, m: (0, 0)),   # resident W^T
            ],
            out_specs=pl.BlockSpec((1, Fout, tt), lambda n, jt, m: (n, 0, jt)),
        ),
        compiler_params=pltpu.CompilerParams(
            dimension_semantics=("parallel", "parallel"),
            vmem_limit_bytes=vmem_limit,
        ),
    )(mask_params, specgram, wt)
    return out


def spec_augment_pallas(specgram, *, warp_axis=2, max_warp_length=0,
                        num_freq_mask=0, freq_max_mask_length=0,
                        freq_mask_max_proportion=1.0,
                        num_time_mask=0, time_max_mask_length=0,
                        time_mask_max_proportion=1.0,
                        mask_value=0.0, seed=0, _force_k_tiled=False):
    if warp_axis not in (1, 2):
        raise ValueError("Only frequency (1) and time (2) warp axes are supported")
    rng = random.Random(seed)

    if specgram.ndim == 2:
        specgram = specgram[None]         # torch keeps the added batch dim too
    N, F, T = specgram.shape
    out_dtype = specgram.dtype

    # --- host-side random parameter generation (same draw order as torch) ----
    warp_dim = T if warp_axis == 2 else F
    Wmat = _build_warp_matrix(warp_dim, max_warp_length, rng)        # (in, out)
    freq_pairs = _gen_mask_intervals(rng, F, num_freq_mask,
                                     freq_max_mask_length, freq_mask_max_proportion)
    time_pairs = _gen_mask_intervals(rng, T, num_time_mask,
                                     time_max_mask_length, time_mask_max_proportion)

    flat = ([v for pr in freq_pairs for v in pr]
            + [v for pr in time_pairs for v in pr])
    mask_params = jnp.asarray(flat if flat else [0], dtype=jnp.int32)
    nfm, ntm = len(freq_pairs), len(time_pairs)

    cap = _vmem_capacity_bytes()
    vmem_limit = min(int(cap * 3) // 4, 112 * 1024 * 1024)

    if warp_axis == 2:
        y = _warp_time_axis(specgram, Wmat, mask_params, nfm, ntm, mask_value,
                            out_dtype, cap, vmem_limit, _force_k_tiled)
    else:
        y = _warp_freq_axis(specgram, Wmat, mask_params, nfm, ntm, mask_value,
                            out_dtype, vmem_limit)
    return y, (Wmat, freq_pairs, time_pairs, warp_axis)


class SpecAugmentTransformPallas:
    """Pallas counterpart of the PyTorch SpecAugmentTransform module."""

    def __init__(self, warp_axis=2, max_warp_length=0, num_freq_mask=0,
                 freq_max_mask_length=0, freq_mask_max_proportion=1.0,
                 num_time_mask=0, time_max_mask_length=0,
                 time_mask_max_proportion=1.0, mask_value=0.0, seed=0):
        self.warp_axis = warp_axis
        self.max_warp_length = max_warp_length
        self.num_freq_mask = num_freq_mask
        self.freq_max_mask_length = freq_max_mask_length
        self.freq_mask_max_proportion = freq_mask_max_proportion
        self.num_time_mask = num_time_mask
        self.time_max_mask_length = time_max_mask_length
        self.time_mask_max_proportion = time_mask_max_proportion
        self.mask_value = mask_value
        self.seed = seed
        self.training = True

    def __call__(self, specgram):
        if not self.training:
            return specgram
        y, _ = spec_augment_pallas(
            specgram,
            warp_axis=self.warp_axis,
            max_warp_length=self.max_warp_length,
            num_freq_mask=self.num_freq_mask,
            freq_max_mask_length=self.freq_max_mask_length,
            freq_mask_max_proportion=self.freq_mask_max_proportion,
            num_time_mask=self.num_time_mask,
            time_max_mask_length=self.time_max_mask_length,
            time_mask_max_proportion=self.time_mask_max_proportion,
            mask_value=self.mask_value,
            seed=self.seed,
        )
        return y


# ---------------------------------------------------------------------------
# Demo / correctness check.
# ---------------------------------------------------------------------------
def _reference_numpy(x, W, freq_pairs, time_pairs, warp_axis, mask_value):
    x = np.asarray(x, dtype=np.float32)
    W = np.asarray(W, dtype=np.float32)
    if warp_axis == 2:
        y = np.einsum("nft,to->nfo", x, W)
    else:
        y = np.einsum("nft,fo->not", x, W)
    for s, e in freq_pairs:
        y[:, s:e, :] = mask_value
    for s, e in time_pairs:
        y[:, :, s:e] = mask_value
    return y


if __name__ == "__main__":
    key = jax.random.PRNGKey(0)
    N, F, T = 2, 24, 48
    x = jax.random.normal(key, (N, F, T), dtype=jnp.float32)

    common = dict(max_warp_length=5,
                  num_freq_mask=2, freq_max_mask_length=6,
                  freq_mask_max_proportion=1.0,
                  num_time_mask=2, time_max_mask_length=10,
                  time_mask_max_proportion=1.0,
                  mask_value=0.0, seed=0)

    # (warp_axis, force K-tiled fallback) — exercises all three kernel paths.
    configs = [(2, False), (1, False), (2, True)]
    for warp_axis, force in configs:
        out, (Wmat, freq_pairs, time_pairs, ax) = spec_augment_pallas(
            x, warp_axis=warp_axis, _force_k_tiled=force, **common)
        out = jax.block_until_ready(out)
        ref = _reference_numpy(np.asarray(x), Wmat, freq_pairs, time_pairs, ax,
                               common["mask_value"])
        # TPU MXU default-precision f32 matmul may internally round operands to
        # bf16, so use a modest tolerance (values are O(1)).
        np.testing.assert_allclose(np.asarray(out), ref, rtol=2e-2, atol=2e-2)

    print("KERNEL_OK")
</pallas_src>

<mosaic_0001>
module attributes {stable_mosaic.version = 11 : i64} {
  func.func @_warp_time_single_k_kernel(%arg0: i32, %arg1: memref<8xi32, #tpu.memory_space<smem>>, %arg2: memref<24x48xf32, #tpu.memory_space<vmem>>, %arg3: memref<48x48xf32, #tpu.memory_space<vmem>>, %arg4: memref<24x48xf32, #tpu.memory_space<vmem>>) attributes {dimension_semantics = [#tpu.dimension_semantics<parallel>], iteration_bounds = array<i64: 2>, scalar_prefetch = 1 : i64, scratch_operands = 0 : i64, tpu.core_type = #tpu.core_type<tc>, window_params = [{transform_indices = @transform_0, window_bounds = array<i64: 24, 48>}, {pipeline_mode = #tpu.pipeline_mode<synchronous>, transform_indices = @transform_1, window_bounds = array<i64: 48, 48>}, {transform_indices = @transform_2, window_bounds = array<i64: 24, 48>}]} {
    %c0 = arith.constant 0 : index
    %c0_0 = arith.constant 0 : index
    %0 = vector.load %arg2[%c0, %c0_0] : memref<24x48xf32, #tpu.memory_space<vmem>>, vector<24x48xf32>
    %c0_1 = arith.constant 0 : index
    %c0_2 = arith.constant 0 : index
    %1 = vector.load %arg3[%c0_1, %c0_2] : memref<48x48xf32, #tpu.memory_space<vmem>>, vector<48x48xf32>
    %cst = arith.constant dense<0.000000e+00> : vector<24x48xf32>
    %2 = tpu.matmul %0, %1, %cst {dimension_numbers = #tpu.dot_dimension_numbers<[1], [0], [0], [1], [0, 0, 1, 1], [], []>} : vector<24x48xf32>, vector<48x48xf32>, vector<24x48xf32> -> vector<24x48xf32>
    %c24_i32 = arith.constant 24 : i32
    %3 = arith.muli %arg0, %c24_i32 : i32
    %4 = tpu.iota {dimensions = array<i32: 0>} : vector<24x1xi32>
    %5 = vector.broadcast %3 : i32 to vector<24x1xi32>
    %6 = arith.addi %5, %4 : vector<24x1xi32>
    %c24_i32_3 = arith.constant 24 : i32
    %c0_i32 = arith.constant 0 : i32
    %7 = arith.cmpi eq, %c24_i32_3, %c0_i32 : i32
    %c1_i32 = arith.constant 1 : i32
    %8 = arith.select %7, %c1_i32, %c24_i32_3 : i32
    %9 = vector.broadcast %8 : i32 to vector<24x1xi32>
    %10 = arith.remsi %6, %9 : vector<24x1xi32>
    %c0_i32_4 = arith.constant 0 : i32
    %11 = vector.broadcast %c0_i32_4 : i32 to vector<24x1xi32>
    %12 = arith.cmpi ne, %10, %11 : vector<24x1xi32>
    %c0_i32_5 = arith.constant 0 : i32
    %13 = vector.broadcast %c0_i32_5 : i32 to vector<24x1xi32>
    %14 = arith.cmpi slt, %10, %13 : vector<24x1xi32>
    %c0_i32_6 = arith.constant 0 : i32
    %15 = arith.cmpi slt, %8, %c0_i32_6 : i32
    %16 = vector.broadcast %15 : i1 to vector<24x1xi1>
    %17 = vector.broadcast %16 : vector<24x1xi1> to vector<24x1xi1>
    %18 = arith.xori %14, %17 : vector<24x1xi1>
    %19 = arith.andi %18, %12 : vector<24x1xi1>
    %20 = vector.broadcast %8 : i32 to vector<24x1xi32>
    %21 = arith.addi %10, %20 : vector<24x1xi32>
    %22 = arith.select %19, %21, %10 : vector<24x1xi1>, vector<24x1xi32>
    %false = arith.constant false
    %23 = vector.broadcast %false : i1 to vector<24x1xi1>
    %c0_7 = arith.constant 0 : index
    %24 = memref.load %arg1[%c0_7] : memref<8xi32, #tpu.memory_space<smem>>
    %c1 = arith.constant 1 : index
    %25 = memref.load %arg1[%c1] : memref<8xi32, #tpu.memory_space<smem>>
    %26 = vector.broadcast %24 : i32 to vector<24x1xi32>
    %27 = arith.cmpi sge, %22, %26 : vector<24x1xi32>
    %28 = vector.broadcast %25 : i32 to vector<24x1xi32>
    %29 = arith.cmpi slt, %22, %28 : vector<24x1xi32>
    %30 = arith.andi %27, %29 : vector<24x1xi1>
    %31 = arith.ori %23, %30 : vector<24x1xi1>
    %c2 = arith.constant 2 : index
    %32 = memref.load %arg1[%c2] : memref<8xi32, #tpu.memory_space<smem>>
    %c3 = arith.constant 3 : index
    %33 = memref.load %arg1[%c3] : memref<8xi32, #tpu.memory_space<smem>>
    %34 = vector.broadcast %32 : i32 to vector<24x1xi32>
    %35 = arith.cmpi sge, %22, %34 : vector<24x1xi32>
    %36 = vector.broadcast %33 : i32 to vector<24x1xi32>
    %37 = arith.cmpi slt, %22, %36 : vector<24x1xi32>
    %38 = arith.andi %35, %37 : vector<24x1xi1>
    %39 = arith.ori %31, %38 : vector<24x1xi1>
    %40 = tpu.iota {dimensions = array<i32: 1>} : vector<1x48xi32>
    %c0_i32_8 = arith.constant 0 : i32
    %41 = vector.broadcast %c0_i32_8 : i32 to vector<1x48xi32>
    %42 = arith.addi %41, %40 : vector<1x48xi32>
    %false_9 = arith.constant false
    %43 = vector.broadcast %false_9 : i1 to vector<1x48xi1>
    %c4 = arith.constant 4 : index
    %44 = memref.load %arg1[%c4] : memref<8xi32, #tpu.memory_space<smem>>
    %c5 = arith.constant 5 : index
    %45 = memref.load %arg1[%c5] : memref<8xi32, #tpu.memory_space<smem>>
    %46 = vector.broadcast %44 : i32 to vector<1x48xi32>
    %47 = arith.cmpi sge, %42, %46 : vector<1x48xi32>
    %48 = vector.broadcast %45 : i32 to vector<1x48xi32>
    %49 = arith.cmpi slt, %42, %48 : vector<1x48xi32>
    %50 = arith.andi %47, %49 : vector<1x48xi1>
    %51 = arith.ori %43, %50 : vector<1x48xi1>
    %c6 = arith.constant 6 : index
    %52 = memref.load %arg1[%c6] : memref<8xi32, #tpu.memory_space<smem>>
    %c7 = arith.constant 7 : index
    %53 = memref.load %arg1[%c7] : memref<8xi32, #tpu.memory_space<smem>>
    %54 = vector.broadcast %52 : i32 to vector<1x48xi32>
    %55 = arith.cmpi sge, %42, %54 : vector<1x48xi32>
    %56 = vector.broadcast %53 : i32 to vector<1x48xi32>
    %57 = arith.cmpi slt, %42, %56 : vector<1x48xi32>
    %58 = arith.andi %55, %57 : vector<1x48xi1>
    %59 = arith.ori %51, %58 : vector<1x48xi1>
    %60 = vector.broadcast %39 : vector<24x1xi1> to vector<24x48xi1>
    %61 = vector.broadcast %59 : vector<1x48xi1> to vector<24x48xi1>
    %62 = arith.ori %60, %61 : vector<24x48xi1>
    %cst_10 = arith.constant 0.000000e+00 : f32
    %63 = vector.broadcast %cst_10 : f32 to vector<24x48xf32>
    %64 = arith.select %62, %63, %2 : vector<24x48xi1>, vector<24x48xf32>
    %c0_11 = arith.constant 0 : index
    %c0_12 = arith.constant 0 : index
    %65 = vector.load %arg4[%c0_11, %c0_12] : memref<24x48xf32, #tpu.memory_space<vmem>>, vector<24x48xf32>
    tpu.vector_store %arg4[%c0_11, %c0_12], %64 {strides = array<i32>} : memref<24x48xf32, #tpu.memory_space<vmem>>, vector<24x48xf32>,
    return
  }
  func.func @transform_0(%arg0: i32, %arg1: memref<8xi32, #tpu.memory_space<smem>>) -> (i32, i32) {
    %c0_i32 = arith.constant 0 : i32
    %c0_i32_0 = arith.constant 0 : i32
    return %arg0, %c0_i32 : i32, i32
  }
  func.func @transform_1(%arg0: i32, %arg1: memref<8xi32, #tpu.memory_space<smem>>) -> (i32, i32) {
    %c0_i32 = arith.constant 0 : i32
    %c0_i32_0 = arith.constant 0 : i32
    %c0_i32_1 = arith.constant 0 : i32
    return %c0_i32, %c0_i32_0 : i32, i32
  }
  func.func @transform_2(%arg0: i32, %arg1: memref<8xi32, #tpu.memory_space<smem>>) -> (i32, i32) {
    %c0_i32 = arith.constant 0 : i32
    %c0_i32_0 = arith.constant 0 : i32
    return %arg0, %c0_i32 : i32, i32
  }
}

</mosaic_0001>

<llo_original>
// kernel: tpu_custom_call.1
$region0: #{tpu_custom_call.1}
  #allocation0 [shape = 'u32[]', space=smem, size = 0x4, offset = 0x4, fixed_abs, tag = 'smem constant byte address 0x4 - core index']
  #allocation1 [shape = 'u32[144,128]{1,0:T(1,128)}', space=vmem, size = 0x12000, scoped, tag = 'internal scratch']
  #allocation2 [shape = 's32[1]{0}', space=sflag, size = 0x4, scoped, tag = 'scoped memory for tpu_custom_call.1']
  #allocation3 [shape = 'u8[512]{0}', space=smem, size = 0x200, scoped, tag = 'prefetched SMEM operand 0']
  %s0 = inlined_call_operand.hbm [shape: s32[8], index: 0, kind: input, shape index: {}]
  %s1 = inlined_call_operand.hbm [shape: f32[48,48], index: 1, kind: input, shape index: {}]
  %s2 = inlined_call_operand.hbm [shape: f32[48,48], index: 2, kind: input, shape index: {}]
  %s3 = inlined_call_operand.hbm [shape: f32[48,48], index: 3, kind: output, shape index: {}]
  %s4 = sld [smem:[#allocation0]]
  $region49: #{tpu_custom_call.1} parent=0
    _
  %s6 = ssub.s32 1, %s4
  %s7 = scalar_select 0, %s6, %s4
  %9 = dma.hbm_to_smem %s0, 16, [#allocation3], [#allocation2]
  %10 = dma.done [#allocation2], 16
  %11 = sfence
  $region1: #{tpu_custom_call.1} parent=0
    #allocation4 [shape = 'u8[24576]{0}', space=vmem, size = 0x6000, scoped, tag = 'input window, operand 1']
    #allocation5 [shape = 's32[2]{0}', space=sflag, size = 0x8, scoped, tag = 'scoped memory for tpu_custom_call.1']
    #allocation6 [shape = 's32[2]{0}', space=sflag, size = 0x8, scoped, tag = 'scoped memory for tpu_custom_call.1']
    #allocation7 [shape = 'u8[24576]{0}', space=vmem, size = 0x6000, scoped, tag = 'input window, operand 2, single buffered']
    #allocation8 [shape = 's32[1]{0}', space=sflag, size = 0x4, scoped, tag = 'scoped memory for tpu_custom_call.1']
    #allocation9 [shape = 'u8[24576]{0}', space=vmem, size = 0x6000, scoped, tag = 'output window, operand 0']
    %12 = vsyncpa [#allocation5], 0
    %s13 = scalar_lea.sflag [#allocation5], 1
    %14 = vsyncpa %s13, 0
    %15 = vsyncpa [#allocation8], 0
    %16 = vsyncpa [#allocation6], 0
    %s17 = scalar_lea.sflag [#allocation6], 1
    %18 = vsyncpa %s17, 0
    loop: start=0, step=1, limit=4
    $region2: #{tpu_custom_call.1} parent=1 // loop_pre_header
      _
    $region3: #{tpu_custom_call.1} parent=1 // loop_header
      %s20 = sphi 0, %s24
      %p21 = scmp.ge.s32.totalorder %s20, 4
      %s30 = sphi 0, %s32
      %s33 = sphi 0, %s30
      %s34 = sphi 0, %s33
      %s50 = sphi 0, %s34
      %s54 = sphi 0, %s54
      %s56 = sphi 0, %s54
      %s57 = sphi 0, %s56
      %s71 = sphi 0, %s57
      %s77 = sphi 0, %s79
      %s80 = sphi 0, %s77
      %s81 = sphi 0, %s80
      %s97 = sphi 0, %s81
    $region4: #{tpu_custom_call.1} parent=1 // loop_header_branch
      %23 = sbr.rel (%p21) target = $region8
    $region5: #{tpu_custom_call.1} parent=1 // loop_body
      %s25 = ssub.s32 %s20, 1
      %s26 = ssub.s32 %s20, 2
      %s27 = sadd.s32 %s20, 1
      %s28 = ssub.s32 %s20, %s27
      %p29 = scmp.eq.s32.totalorder %s28, 0
      %s31 = sadd.s32 %s30, 1
      %s32 = scalar_select %p29, %s30, %s31
      %p35 = pneg %p29
      %p36 = scmp.eq.s32.totalorder %s20, 1
      %p37 = por %p35, %p36
      %p38 = scmp.ne.s32.totalorder %s30, %s33
      %p39 = scmp.eq.s32.totalorder %s20, 0
      %p40 = por %p38, %p39
      %p41 = scmp.ne.s32.totalorder %s30, %s33
      %p42 = scmp.eq.s32.totalorder %s25, 1
      %p43 = por %p41, %p42
      %p44 = scmp.ne.s32.totalorder %s33, %s34
      %p45 = scmp.eq.s32.totalorder %s25, 0
      %p46 = por %p44, %p45
      %p47 = scmp.ne.s32.totalorder %s33, %s34
      %p48 = scmp.eq.s32.totalorder %s26, 1
      %p49 = por %p47, %p48
      %p51 = scmp.ne.s32.totalorder %s34, %s50
      %p52 = scmp.eq.s32.totalorder %s26, 0
      %p53 = por %p51, %p52
      %s55 = sadd.s32 %s54, 1
      %p58 = scmp.eq.s32.totalorder %s20, 1
      %p59 = scmp.ne.s32.totalorder %s54, %s56
      %p60 = scmp.eq.s32.totalorder %s20, 0
      %p61 = por %p59, %p60
      %p62 = scmp.ne.s32.totalorder %s54, %s56
      %p63 = scmp.eq.s32.totalorder %s25, 1
      %p64 = por %p62, %p63
      %p65 = scmp.ne.s32.totalorder %s56, %s57
      %p66 = scmp.eq.s32.totalorder %s25, 0
      %p67 = por %p65, %p66
      %p68 = scmp.ne.s32.totalorder %s56, %s57
      %p69 = scmp.eq.s32.totalorder %s26, 1
      %p70 = por %p68, %p69
      %p72 = scmp.ne.s32.totalorder %s57, %s71
      %p73 = scmp.eq.s32.totalorder %s26, 0
      %p74 = por %p72, %p73
      %s75 = ssub.s32 %s20, %s27
      %p76 = scmp.eq.s32.totalorder %s75, 0
      %s78 = sadd.s32 %s77, 1
      %s79 = scalar_select %p76, %s77, %s78
      %p82 = pneg %p76
      %p83 = scmp.eq.s32.totalorder %s20, 1
      %p84 = por %p82, %p83
      %p85 = scmp.ne.s32.totalorder %s77, %s80
      %p86 = scmp.eq.s32.totalorder %s20, 0
      %p87 = por %p85, %p86
      %p88 = scmp.ne.s32.totalorder %s77, %s80
      %p89 = scmp.eq.s32.totalorder %s25, 1
      %p90 = por %p88, %p89
      %p91 = scmp.ne.s32.totalorder %s80, %s81
      %p92 = scmp.eq.s32.totalorder %s25, 0
      %p93 = por %p91, %p92
      %p94 = scmp.ne.s32.totalorder %s80, %s81
      %p95 = scmp.eq.s32.totalorder %s26, 1
      %p96 = por %p94, %p95
      %p98 = scmp.ne.s32.totalorder %s81, %s97
      %p99 = scmp.eq.s32.totalorder %s26, 0
      %p100 = por %p98, %p99
      %p101 = scmp.le.s32.totalorder 1, %s20
      %p102 = scmp.lt.s32.totalorder %s20, 3
      %p103 = pnand %p101, %p102
      %p104 = pneg %p103
      // Predicated region
      $region9: #{tpu_custom_call.1} parent=5 // pred_check
        _
      $region10: #{tpu_custom_call.1} parent=5 // pred_check_branch
        %106 = sbr.rel (%p103) target = $region12
      $region11: #{tpu_custom_call.1} parent=5 // pred_region
        %s107 = ssub.s32 %s20, 1
        // Predicated region
        $region13: #{tpu_custom_call.1} parent=11 // pred_check
          %p108 = pneg %p67
        $region14: #{tpu_custom_call.1} parent=11 // pred_check_branch
          %110 = sbr.rel (%p108) target = $region16
        $region15: #{tpu_custom_call.1} parent=11 // pred_region
          %s112 = ssub.s32 768, 768
          %113 = vsyncadd [#allocation8], %s112
          %s114 = sshll.u32 [#allocation7], 4
          %s115 = int_to_ptr.vmem [resolvable:$true] %s114
          %120 = dma.hbm_to_vmem [thread:$0]  %s2, 768, %s115, [#allocation8], 128, 128, 8
        $region16: #{tpu_custom_call.1} parent=11 // pred_fallthru
          _
      $region12: #{tpu_custom_call.1} parent=5 // pred_fallthru
        _
      %p121 = scmp.lt.s32.totalorder %s20, 2
      // Predicated region
      $region17: #{tpu_custom_call.1} parent=5 // pred_check
        %p122 = pneg %p121
      $region18: #{tpu_custom_call.1} parent=5 // pred_check_branch
        %124 = sbr.rel (%p122) target = $region20
      $region19: #{tpu_custom_call.1} parent=5 // pred_region
        // Predicated region
        $region21: #{tpu_custom_call.1} parent=19 // pred_check
          %p125 = pneg %p40
        $region22: #{tpu_custom_call.1} parent=19 // pred_check_branch
          %127 = sbr.rel (%p125) target = $region24
        $region23: #{tpu_custom_call.1} parent=19 // pred_region
          %s128 = sand.u32 %s30, 1
          %s129 = scalar_lea.sflag [#allocation5], %s128
          %s130 = sand.u32 %s30, 1
          %s131 = smul.addr %s130, 24
          %s132 = scalar_lea.vmem [#allocation4], %s131
          %s133 = smul.u32 3, %s20
          %s135 = ssub.s32 384, 384
          %136 = vsyncadd %s129, %s135
          %s137 = smul.addr %s133, 128
          %s138 = scalar_lea.hbm %s1, %s137
          %s139 = sshll.u32 %s132, 4
          %s140 = int_to_ptr.vmem [resolvable:$true] %s139
          %145 = dma.hbm_to_vmem [thread:$0]  %s138, 384, %s140, %s129, 128, 128, 8
        $region24: #{tpu_custom_call.1} parent=19 // pred_fallthru
          _
      $region20: #{tpu_custom_call.1} parent=5 // pred_fallthru
        _
      %p146 = scmp.le.s32.totalorder 1, %s20
      %p147 = scmp.lt.s32.totalorder %s20, 3
      %p148 = pnand %p146, %p147
      %p149 = pneg %p148
      // Predicated region
      $region25: #{tpu_custom_call.1} parent=5 // pred_check
        _
      $region26: #{tpu_custom_call.1} parent=5 // pred_check_branch
        %151 = sbr.rel (%p148) target = $region28
      $region27: #{tpu_custom_call.1} parent=5 // pred_region
        %s152 = ssub.s32 %s20, 1
        %s153 = sand.u32 %s33, 1
        %s154 = scalar_lea.sflag [#allocation5], %s153
        %s155 = sand.u32 %s33, 1
        %s156 = smul.addr %s155, 24
        %s157 = scalar_lea.vmem [#allocation4], %s156
        // Predicated region
        $region29: #{tpu_custom_call.1} parent=27 // pred_check
          %p158 = pneg %p46
        $region30: #{tpu_custom_call.1} parent=27 // pred_check_branch
          %160 = sbr.rel (%p158) target = $region32
        $region31: #{tpu_custom_call.1} parent=27 // pred_region
          %161 = dma.done %s154, 384
        $region32: #{tpu_custom_call.1} parent=27 // pred_fallthru
          _
        // Predicated region
        $region33: #{tpu_custom_call.1} parent=27 // pred_check
          %p162 = pneg %p67
        $region34: #{tpu_custom_call.1} parent=27 // pred_check_branch
          %164 = sbr.rel (%p162) target = $region36
        $region35: #{tpu_custom_call.1} parent=27 // pred_region
          %165 = dma.done [#allocation8], 768
        $region36: #{tpu_custom_call.1} parent=27 // pred_fallthru
          _
        %s166 = sand.u32 %s33, 1
        %s167 = scalar_lea.sflag [#allocation5], %s166
        %s168 = sand.u32 %s33, 1
        %s169 = smul.addr %s168, 24
        %s170 = scalar_lea.vmem [#allocation4], %s169
        %p171 = pneg %p46
        %p172 = pneg %p43
        %p173 = pneg %p67
        %p174 = pneg %p64
        %p175 = pneg %p93
        %p176 = pneg %p90
        %s177 = sand.u32 %s80, 1
        %s178 = scalar_lea.sflag [#allocation6], %s177
        %s179 = sand.u32 %s80, 1
        %s180 = smul.addr %s179, 24
        %s181 = scalar_lea.vmem [#allocation9], %s180
        %s182 = smul.u32 3, %s25
        %s183 = smul.u32 3, %s25
        %v184 = vld [vmem:[%s157] sm:$0xff]
        %v185 = vld [vmem:[%s157 + $0x8] sm:$0xff]
        %v186 = vld [vmem:[%s157 + $0x10] sm:$0xff]
        %v187 = vld [vmem:[#allocation7] sm:$0xff]
        %v188 = vld [vmem:[#allocation7 + $0x8] sm:$0xff]
        %v189 = vld [vmem:[#allocation7 + $0x10] sm:$0xff]
        %v190 = vld [vmem:[#allocation7 + $0x18] sm:$0xff]
        %v191 = vld [vmem:[#allocation7 + $0x20] sm:$0xff]
        %v192 = vld [vmem:[#allocation7 + $0x28] sm:$0xff]
        %vm193 = vcmask 392192
        %v195 = vsel %vm193, %v184, 0
        %v198 = vsel %vm193, %v185, 0
        %v201 = vsel %vm193, %v186, 0
        %203 = vmatprep.subr.mxu0 0.0
        %204 = vmatpush1.msra.mxu0 %v187
        %205 = vmatprep.subr.mxu0 0.0
        %206 = vmatpush1.msra.mxu0 %v188
        %207 = vmatprep.subr.mxu0 0.0
        %208 = vmatpush1.msra.mxu0 %v189
        %209 = vmatprep.subr.mxu0 0.0
        %210 = vmatpush1.msra.mxu0 %v190
        %211 = vmatprep.subr.mxu0 0.0
        %212 = vmatpush1.msra.mxu0 %v191
        %213 = vmatprep.subr.mxu0 0.0
        %214 = vmatpush1.msra.mxu0 %v192
        %215 = vmatprep.subr.mxu0 0.0
        %216 = vmatpush1.msra.mxu0 0.0
        %217 = vmatprep.subr.mxu0 0.0
        %218 = vmatpush1.msra.mxu0 0.0
        %219 = vmatprep.subr.mxu0 0.0
        %220 = vmatpush1.msra.mxu0 0.0
        %221 = vmatprep.subr.mxu0 0.0
        %222 = vmatpush1.msra.mxu0 0.0
        %223 = vmatprep.subr.mxu0 0.0
        %224 = vmatpush1.msra.mxu0 0.0
        %225 = vmatprep.subr.mxu0 0.0
        %226 = vmatpush1.msra.mxu0 0.0
        %227 = vmatprep.subr.mxu0 0.0
        %228 = vmatpush1.msra.mxu0 0.0
        %229 = vmatprep.subr.mxu0 0.0
        %230 = vmatpush1.msra.mxu0 0.0
        %231 = vmatprep.subr.mxu0 0.0
        %232 = vmatpush1.msra.mxu0 0.0
        %233 = vmatprep.subr.mxu0 0.0
        %234 = vmatpush1.msra.mxu0 0.0
        %235 = vmatprep.subr.mxu0 0.0
        %236 = vmatpush1.msra.mxu0 0.0
        %237 = vmatprep.subr.mxu0 0.0
        %238 = vmatpush1.msra.mxu0 0.0
        %239 = vmatprep.subr.mxu0 0.0
        %240 = vmatpush1.msra.mxu0 0.0
        %241 = vmatprep.subr.mxu0 0.0
        %242 = vmatpush1.msra.mxu0 0.0
        %243 = vmatprep.subr.mxu0 0.0
        %244 = vmatpush1.msra.mxu0 0.0
        %245 = vmatprep.subr.mxu0 0.0
        %246 = vmatpush1.msra.mxu0 0.0
        %247 = vmatprep.subr.mxu0 0.0
        %248 = vmatpush1.msra.mxu0 0.0
        %249 = vmatprep.subr.mxu0 0.0
        %250 = vmatpush1.msra.mxu0 0.0
        %251 = vmatprep.subr.mxu0 0.0
        %252 = vmatpush1.msra.mxu0 0.0
        %253 = vmatprep.subr.mxu0 0.0
        %254 = vmatpush1.msra.mxu0 0.0
        %255 = vmatprep.subr.mxu0 0.0
        %256 = vmatpush1.msra.mxu0 0.0
        %257 = vmatprep.subr.mxu0 0.0
        %258 = vmatpush1.msra.mxu0 0.0
        %259 = vmatprep.subr.mxu0 0.0
        %260 = vmatpush1.msra.mxu0 0.0
        %261 = vmatprep.subr.mxu0 0.0
        %262 = vmatpush1.msra.mxu0 0.0
        %263 = vmatprep.subr.mxu0 0.0
        %264 = vmatpush1.msra.mxu0 0.0
        %265 = vmatprep.subr.mxu0 0.0
        %266 = vmatpush1.msra.mxu0 0.0
        %267 = vmatprep.mubr.f32.mxu0 0.0
        %268 = vmatmul.mubr.f32.gmra.mrb[0].mxu0 %v195
        %v269 = vpop.f32.mrb[0].mxu0
        %v270 = vadd.f32 0.0, %v269
        %v271 = vpop.f32.mrb[0].mxu0
        %272 = vmatprep.mubr.f32.mxu0 0.0
        %273 = vmatmul.mubr.f32.gmra.mrb[0].mxu0 %v198
        %v274 = vpop.f32.mrb[0].mxu0
        %v275 = vadd.f32 0.0, %v274
        %v276 = vpop.f32.mrb[0].mxu0
        %277 = vmatprep.mubr.f32.mxu0 0.0
        %278 = vmatmul.mubr.f32.gmra.mrb[0].mxu0 %v201
        %v279 = vpop.f32.mrb[0].mxu0
        %v280 = vadd.f32 0.0, %v279
        %v281 = vpop.f32.mrb[0].mxu0
        %282 = vdwg.mxu0
        %s283 = smul.u32 %s25, 24
        %v284 = vlaneseq
        %v285 = vshrl.u32 %v284, 7
        %v286 = vadd.s32 %v285, 8
        %v287 = vadd.s32 %v285, 16
        %v288 = vstv %s283
        %v289 = vadd.s32 %v288, %v285
        %v290 = vadd.s32 %v288, %v286
        %v291 = vadd.s32 %v288, %v287
        %vm292 = vcmp.lt.s32.totalorder %v289, 0
        %v293 = vsub.s32 0, %v289
        %v294 = vsel %vm292, %v293, %v289
        %v295 = vmul.u32.u64.compose %v294, 2863311531
        %v296 = vextract.low.u32 %v295
        %v297 = vextract.high.u32 %v295
        %v298 = vshrl.u32 %v297, 4
        %v299 = vmul.u32 %v298, 24
        %v300 = vsub.s32 %v294, %v299
        %v301 = vsub.s32 0, %v300
        %v302 = vsel %vm292, %v301, %v300
        %vm303 = vcmp.lt.s32.totalorder %v290, 0
        %v304 = vsub.s32 0, %v290
        %v305 = vsel %vm303, %v304, %v290
        %v306 = vmul.u32.u64.compose %v305, 2863311531
        %v307 = vextract.low.u32 %v306
        %v308 = vextract.high.u32 %v306
        %v309 = vshrl.u32 %v308, 4
        %v310 = vmul.u32 %v309, 24
        %v311 = vsub.s32 %v305, %v310
        %v312 = vsub.s32 0, %v311
        %v313 = vsel %vm303, %v312, %v311
        %vm314 = vcmp.lt.s32.totalorder %v291, 0
        %v315 = vsub.s32 0, %v291
        %v316 = vsel %vm314, %v315, %v291
        %v317 = vmul.u32.u64.compose %v316, 2863311531
        %v318 = vextract.low.u32 %v317
        %v319 = vextract.high.u32 %v317
        %v320 = vshrl.u32 %v319, 4
        %v321 = vmul.u32 %v320, 24
        %v322 = vsub.s32 %v316, %v321
        %v323 = vsub.s32 0, %v322
        %v324 = vsel %vm314, %v323, %v322
        %vm325 = vcmp.ne.s32.totalorder %v302, 0
        %vm326 = vcmp.ne.s32.totalorder %v313, 0
        %vm327 = vcmp.ne.s32.totalorder %v324, 0
        %vm328 = vcmp.lt.s32.totalorder %v302, 0
        %vm329 = vcmp.lt.s32.totalorder %v313, 0
        %vm330 = vcmp.lt.s32.totalorder %v324, 0
        %vm331 = vmand %vm328, %vm325
        %vm332 = vmand %vm329, %vm326
        %vm333 = vmand %vm330, %vm327
        %v334 = vadd.s32 %v302, 24
        %v335 = vadd.s32 %v313, 24
        %v336 = vadd.s32 %v324, 24
        %v337 = vsel %vm331, %v334, %v302
        %v338 = vsel %vm332, %v335, %v313
        %v339 = vsel %vm333, %v336, %v324
        %s340 = sld [smem:[#allocation3]]
        %s341 = sld [smem:[#allocation3 + $0x1]]
        %v342 = vstv %s340
        %vm343 = vcmp.ge.s32.totalorder %v337, %v342
        %vm344 = vcmp.ge.s32.totalorder %v338, %v342
        %vm345 = vcmp.ge.s32.totalorder %v339, %v342
        %v346 = vstv %s341
        %vm347 = vcmp.lt.s32.totalorder %v337, %v346
        %vm348 = vcmp.lt.s32.totalorder %v338, %v346
        %vm349 = vcmp.lt.s32.totalorder %v339, %v346
        %vm350 = vmand %vm343, %vm347
        %vm351 = vmand %vm344, %vm348
        %vm352 = vmand %vm345, %vm349
        %s353 = sld [smem:[#allocation3 + $0x2]]
        %s354 = sld [smem:[#allocation3 + $0x3]]
        %v355 = vstv %s353
        %vm356 = vcmp.ge.s32.totalorder %v337, %v355
        %vm357 = vcmp.ge.s32.totalorder %v338, %v355
        %vm358 = vcmp.ge.s32.totalorder %v339, %v355
        %v359 = vstv %s354
        %vm360 = vcmp.lt.s32.totalorder %v337, %v359
        %vm361 = vcmp.lt.s32.totalorder %v338, %v359
        %vm362 = vcmp.lt.s32.totalorder %v339, %v359
        %vm363 = vmand %vm356, %vm360
        %vm364 = vmand %vm357, %vm361
        %vm365 = vmand %vm358, %vm362
        %vm366 = vmor %vm350, %vm363
        %vm367 = vmor %vm351, %vm364
        %vm368 = vmor %vm352, %vm365
        %v369 = vlaneseq
        %v370 = vand.u32 %v369, 127
        %s371 = sld [smem:[#allocation3 + $0x4]]
        %s372 = sld [smem:[#allocation3 + $0x5]]
        %v373 = vstv %s371
        %vm374 = vcmp.ge.s32.totalorder %v370, %v373
        %v375 = vstv %s372
        %vm376 = vcmp.lt.s32.totalorder %v370, %v375
        %vm377 = vmand %vm374, %vm376
        %s378 = sld [smem:[#allocation3 + $0x6]]
        %s379 = sld [smem:[#allocation3 + $0x7]]
        %v380 = vstv %s378
        %vm381 = vcmp.ge.s32.totalorder %v370, %v380
        %v382 = vstv %s379
        %vm383 = vcmp.lt.s32.totalorder %v370, %v382
        %vm384 = vmand %vm381, %vm383
        %vm385 = vmor %vm377, %vm384
        %v386 = vsel %vm366, 1, 0
        %v387 = vsel %vm367, 1, 0
        %v388 = vsel %vm368, 1, 0
        %vm389 = vcmp.eq.s32.totalorder %v386, 1
        %vm390 = vcmp.eq.s32.totalorder %v387, 1
        %vm391 = vcmp.eq.s32.totalorder %v388, 1
        %v392 = vsel %vm385, 1, 0
        %vm393 = vcmp.eq.s32.totalorder %v392, 1
        %vm394 = vmor %vm389, %vm393
        %vm395 = vmor %vm390, %vm393
        %vm396 = vmor %vm391, %vm393
        %v397 = vsel %vm394, 0.0, %v270
        %v398 = vsel %vm395, 0.0, %v275
        %v399 = vsel %vm396, 0.0, %v280
        %400 = vst.msk [vmem:[%s181] sm:$0xff] %vm193, %v397
        %401 = vst.msk [vmem:[%s181 + $0x8] sm:$0xff] %vm193, %v398
        %402 = vst.msk [vmem:[%s181 + $0x10] sm:$0xff] %vm193, %v399
        %s403 = sand.u32 %s80, 1
        %s404 = scalar_lea.sflag [#allocation6], %s403
        %s405 = sand.u32 %s80, 1
        %s406 = smul.addr %s405, 24
        %s407 = scalar_lea.vmem [#allocation9], %s406
        // Predicated region
        $region37: #{tpu_custom_call.1} parent=27 // pred_check
          %p408 = pneg %p90
        $region38: #{tpu_custom_call.1} parent=27 // pred_check_branch
          %410 = sbr.rel (%p408) target = $region40
        $region39: #{tpu_custom_call.1} parent=27 // pred_region
          %s411 = smul.u32 3, %s25
          %s413 = ssub.s32 384, 384
          %414 = vsyncadd %s404, %s413
          %s415 = smul.addr %s411, 128
          %s416 = scalar_lea.hbm %s3, %s415
          %s417 = sshll.u32 %s407, 4
          %s418 = int_to_ptr.vmem [resolvable:$true] %s417
          %423 = dma.vmem_to_hbm [thread:$0]  %s418, 384, %s416, %s404, 128, 128, 8
        $region40: #{tpu_custom_call.1} parent=27 // pred_fallthru
          _
      $region28: #{tpu_custom_call.1} parent=5 // pred_fallthru
        _
      %p424 = scmp.le.s32.totalorder 2, %s20
      // Predicated region
      $region41: #{tpu_custom_call.1} parent=5 // pred_check
        %p425 = pneg %p424
      $region42: #{tpu_custom_call.1} parent=5 // pred_check_branch
        %427 = sbr.rel (%p425) target = $region44
      $region43: #{tpu_custom_call.1} parent=5 // pred_region
        %s428 = ssub.s32 %s20, 2
        // Predicated region
        $region45: #{tpu_custom_call.1} parent=43 // pred_check
          %p429 = pneg %p96
        $region46: #{tpu_custom_call.1} parent=43 // pred_check_branch
          %431 = sbr.rel (%p429) target = $region48
        $region47: #{tpu_custom_call.1} parent=43 // pred_region
          %s432 = sand.u32 %s81, 1
          %s433 = scalar_lea.sflag [#allocation6], %s432
          %s434 = sand.u32 %s81, 1
          %s435 = smul.addr %s434, 24
          %s436 = scalar_lea.vmem [#allocation9], %s435
          %437 = dma.done %s433, 384
        $region48: #{tpu_custom_call.1} parent=43 // pred_fallthru
          _
      $region44: #{tpu_custom_call.1} parent=5 // pred_fallthru
        _
    $region6: #{tpu_custom_call.1} parent=1 // loop_footer
      %s24 = sadd.s32 1, %s20
    $region7: #{tpu_custom_call.1} parent=1 // loop_footer_branch
      %19 = sbr.rel target = $region3
    $region8: #{tpu_custom_call.1} parent=1 // loop_exit
      _
    %438 = vsyncpa [#allocation5], 1
    %s439 = scalar_lea.sflag [#allocation5], 1
    %440 = vsyncpa %s439, 1
    %441 = vsyncpa [#allocation8], 1
    %442 = vsyncpa [#allocation6], 1
    %s443 = scalar_lea.sflag [#allocation6], 1
    %444 = vsyncpa %s443, 1

</llo_original>
